<compile_context>
chip_gen: v5e
topology: v5e:2x2
jax: 0.10.0
libtpu: 0.0.40
codegen_flags: <defaults>
</compile_context>

<pallas_src>
import functools

import jax
import jax.numpy as jnp
from jax import lax
from jax.experimental import pallas as pl
from jax.experimental.pallas import tpu as pltpu


# ---------------------------------------------------------------------------
# Pass 1: feat / feat_prob
#   feat = c0 * attributes + c1 * (mask @ attributes)
#   scalars (SMEM): [c0, c1, inv_T, log_e]
# ---------------------------------------------------------------------------
def _feat_kernel(scalars_ref, mask_ref, attr_k_ref, attr_m_ref,
                 feat_ref, feat_prob_ref, *, compute_dtype):
    k = pl.program_id(1)

    @pl.when(k == 0)
    def _():
        feat_ref[...] = jnp.zeros_like(feat_ref)

    # int8 {0,1} mask -> matmul dtype (exact cast); accumulate directly into the
    # revisited f32 output block (saves the (tm, D) scratch + epilogue copy).
    lhs = mask_ref[...].astype(compute_dtype)
    rhs = attr_k_ref[...].astype(compute_dtype)
    feat_ref[...] += jnp.dot(lhs, rhs, preferred_element_type=jnp.float32)

    @pl.when(k == pl.num_programs(1) - 1)
    def _():
        c0 = scalars_ref[0]          # r + 1e-8
        c1 = scalars_ref[1]          # W * (1 - (r + 1e-8))
        feat = c0 * attr_m_ref[...] + c1 * feat_ref[...]
        feat_ref[...] = feat
        feat_prob_ref[...] = jnp.tanh(feat)


# ---------------------------------------------------------------------------
# Pass 2: one lane-dense column block of x
#   g = feat @ feat[cols].T   (dot_general contracting on D)
#   x = tanh((exp(g*inv_T + ln e) - min_col) * 1/(max_col - min_col + 1e-4) + 1e-4)
# ---------------------------------------------------------------------------
def _x_kernel(scalars_ref, feat_all_ref, feat_col_ref, x_ref, *,
              n_valid, n_pad, bf16_transcendentals):
    inv_T = scalars_ref[2]
    log_e = scalars_ref[3]

    g = lax.dot_general(
        feat_all_ref[...], feat_col_ref[...],
        dimension_numbers=(((1,), (1,)), ((), ())),
        preferred_element_type=jnp.float32)                 # (N_pad, TN)

    # e folded into the exponent (requires e > 0, as in this model's usage);
    # pass 2 is EUP-bound so exp/tanh set the floor, everything else is filler.
    t = g * inv_T + log_e
    if bf16_transcendentals:                                # opt-in (v6e/v7x EUP bf16)
        x = jnp.exp(t.astype(jnp.bfloat16)).astype(jnp.float32)
    else:
        x = jnp.exp(t)

    # Per-column (axis=0) min/max; all rows of the column block are resident.
    # Padded (zero) rows are excluded so padding does not perturb the range.
    if n_valid != n_pad:
        rows = lax.broadcasted_iota(jnp.int32, x.shape, 0)
        valid = rows < n_valid
        min_v = jnp.min(jnp.where(valid, x, jnp.inf), axis=0, keepdims=True)
        max_v = jnp.max(jnp.where(valid, x, -jnp.inf), axis=0, keepdims=True)
    else:
        min_v = jnp.min(x, axis=0, keepdims=True)
        max_v = jnp.max(x, axis=0, keepdims=True)

    inv_den = pl.reciprocal(max_v - min_v + 1e-4, approx=False)
    y = (x - min_v) * inv_den + 1e-4
    if bf16_transcendentals:
        x_ref[...] = jnp.tanh(y.astype(jnp.bfloat16)).astype(x_ref.dtype)
    else:
        x_ref[...] = jnp.tanh(y)


def _pick_tile(n, want, *, min_blocks=1):
    """Largest multiple of 128 dividing n, <= want, leaving >= min_blocks blocks."""
    best = 128
    for t in range(128, n + 1, 128):
        if n % t == 0 and t <= want and (n // t) >= min_blocks:
            best = max(best, t)
    return best


def agent_policy_forward(attributes, edges, T, e, r, W, persona,
                         *, tile_m=256, tile_k=512, tile_n=512,
                         use_bf16_matmul=False,          # opt-in (v5e MXU path)
                         use_bf16_transcendentals=False,  # opt-in (v6e/v7x EUP path)
                         vmem_limit_bytes=None):
    """attributes: (N, D) f32, edges: (N, N), T/e: (P,), r/W: (P, 1)."""
    N, D = attributes.shape
    assert edges.shape == (N, N)

    attributes = attributes.astype(jnp.float32)

    # Pre-binarized int8 adjacency: 4x smaller HBM stream / VMEM tile in pass 1.
    # Callers that already hold an int/bool adjacency avoid the extra (N,N) pass.
    mask = (edges > 0).astype(jnp.int8)

    # Per-persona scalars, folded once (read from SMEM inside the kernels).
    r_p = r[persona, 0].astype(jnp.float32) + 1e-8
    c1 = W[persona, 0].astype(jnp.float32) * (1.0 - r_p)
    inv_T = 1.0 / T[persona].astype(jnp.float32)
    log_e = jnp.log(e[persona].astype(jnp.float32))   # exp(g/T)*e == exp(g/T + ln e), e > 0
    scalars = jnp.stack([r_p, c1, inv_T, log_e])

    # Pad N to a multiple of 128 so the tiled, pipelined path is used for any N.
    n_pad = ((N + 127) // 128) * 128
    if n_pad != N:
        attributes_p = jnp.pad(attributes, ((0, n_pad - N), (0, 0)))
        mask = jnp.pad(mask, ((0, n_pad - N), (0, n_pad - N)))
    else:
        attributes_p = attributes

    # Generation-aware knobs: v7x has 2 TensorCores (keep >= 2 blocks per
    # "parallel" axis for megacore sharding) and only 64 MiB physical VMEM.
    kind = jax.devices()[0].device_kind.lower()
    two_cores = ("v7" in kind) or ("7x" in kind)
    if vmem_limit_bytes is None:
        vmem_limit_bytes = (32 if two_cores else 64) * 1024 * 1024

    min_blocks = 2 if two_cores else 1
    tm = _pick_tile(n_pad, tile_m, min_blocks=min_blocks)
    tk = _pick_tile(n_pad, tile_k)
    tn = _pick_tile(n_pad, tile_n, min_blocks=min_blocks)

    compute_dtype = jnp.bfloat16 if use_bf16_matmul else jnp.float32

    # ---- pass 1: feat / feat_prob (tiled int8-mask @ attributes) ------------
    feat_p, feat_prob_p = pl.pallas_call(
        functools.partial(_feat_kernel, compute_dtype=compute_dtype),
        out_shape=(jax.ShapeDtypeStruct((n_pad, D), jnp.float32),
                   jax.ShapeDtypeStruct((n_pad, D), jnp.float32)),
        grid=(n_pad // tm, n_pad // tk),
        in_specs=[
            pl.BlockSpec(memory_space=pltpu.MemorySpace.SMEM),   # scalar params
            pl.BlockSpec((tm, tk), lambda i, k: (i, k)),         # int8 mask tile
            pl.BlockSpec((tk, D), lambda i, k: (k, 0)),          # attrs (contraction)
            pl.BlockSpec((tm, D), lambda i, k: (i, 0)),          # attrs (epilogue)
        ],
        out_specs=(
            pl.BlockSpec((tm, D), lambda i, k: (i, 0)),          # feat (accumulator)
            pl.BlockSpec((tm, D), lambda i, k: (i, 0)),          # feat_prob
        ),
        compiler_params=pltpu.CompilerParams(
            dimension_semantics=("parallel", "arbitrary"),
            vmem_limit_bytes=vmem_limit_bytes),
    )(scalars, mask, attributes_p, attributes_p)

    # ---- pass 2: x, column-blocked gram + per-column min/max + tanh ---------
    # Resident full-feat operand: constant block index, nothing to prefetch.
    # Single-buffer it only once the duplicate copy is significant (v7x large-N
    # VMEM guard); at small N the default double-buffered path is kept.
    feat_bytes = n_pad * D * 4
    if feat_bytes >= 4 * 1024 * 1024:
        feat_all_spec = pl.BlockSpec((n_pad, D), lambda j: (0, 0),
                                     pipeline_mode=pl.Buffered(1))
    else:
        feat_all_spec = pl.BlockSpec((n_pad, D), lambda j: (0, 0))

    x_p = pl.pallas_call(
        functools.partial(_x_kernel, n_valid=N, n_pad=n_pad,
                          bf16_transcendentals=use_bf16_transcendentals),
        out_shape=jax.ShapeDtypeStruct((n_pad, n_pad), jnp.float32),
        grid=(n_pad // tn,),
        in_specs=[
            pl.BlockSpec(memory_space=pltpu.MemorySpace.SMEM),   # scalar params
            feat_all_spec,                                       # full feat (resident)
            pl.BlockSpec((tn, D), lambda j: (j, 0)),             # rows of column block
        ],
        out_specs=pl.BlockSpec((n_pad, tn), lambda j: (0, j)),
        compiler_params=pltpu.CompilerParams(
            dimension_semantics=("parallel",),
            vmem_limit_bytes=vmem_limit_bytes),
    )(scalars, feat_p, feat_p)

    if n_pad != N:
        return x_p[:N, :N], feat_p[:N], feat_prob_p[:N]
    return x_p, feat_p, feat_prob_p


def agent_policy_reference(attributes, edges, T, e, r, W, persona):
    """Pure-JAX mirror of the PyTorch forward (incl. the trailing +1e-4)."""
    edges = (edges > 0).astype(jnp.float32)
    tmp = W[persona] * (edges @ attributes)
    rr = r[persona] + 1e-8
    feat = rr * attributes + tmp * (1.0 - rr)
    feat_prob = jnp.tanh(feat)
    x = feat @ feat.T
    x = jnp.exp(x / T[persona]) * e[persona]
    min_v = jnp.min(x, axis=0)
    max_v = jnp.max(x, axis=0)
    x = (x - min_v) / (max_v - min_v + 1e-4) + 1e-4
    return jnp.tanh(x), feat, feat_prob


if __name__ == "__main__":
    # Lane-dense small problem: N=256 nodes, D=128 features, P=4 personas.
    N, D, P = 256, 128, 4
    persona = 2

    T = jnp.array([1.0, 1.5, 2.0, 2.5], dtype=jnp.float32)           # (P,)
    e = jnp.array([0.5, 0.75, 1.25, 0.9], dtype=jnp.float32)         # (P,)
    r = jnp.array([0.1, 0.3, 0.6, 0.8], dtype=jnp.float32)[:, None]  # (P, 1)
    W = jnp.array([0.2, 0.4, 0.7, 0.9], dtype=jnp.float32)[:, None]  # (P, 1)

    key = jax.random.PRNGKey(0)
    k_attr, k_edges = jax.random.split(key)
    # Small feature scale keeps exp((feat @ feat.T)/T) comfortably finite
    # (the PyTorch model applies no max-subtraction; we keep identical math).
    attributes = 0.02 * jax.random.normal(k_attr, (N, D), dtype=jnp.float32)
    edges = jax.random.normal(k_edges, (N, N), dtype=jnp.float32)  # ~half > 0

    x, feat, feat_prob = agent_policy_forward(attributes, edges, T, e, r, W, persona)
    jax.block_until_ready((x, feat, feat_prob))

    x_ref, feat_ref, feat_prob_ref = agent_policy_reference(
        attributes, edges, T, e, r, W, persona)
    assert jnp.allclose(feat, feat_ref, atol=2e-5, rtol=2e-5)
    assert jnp.allclose(feat_prob, feat_prob_ref, atol=2e-5, rtol=2e-5)
    # x tolerance is slightly looser: e is folded into the exponent (ln/exp rounding).
    assert jnp.allclose(x, x_ref, atol=5e-5, rtol=5e-5)

    print("KERNEL_OK")
</pallas_src>

<mosaic_0001>
module attributes {stable_mosaic.version = 11 : i64} {
  func.func @_feat_kernel(%arg0: i32, %arg1: i32, %arg2: memref<4xf32, #tpu.memory_space<smem>>, %arg3: memref<256x256xi8, #tpu.memory_space<vmem>>, %arg4: memref<256x128xf32, #tpu.memory_space<vmem>>, %arg5: memref<256x128xf32, #tpu.memory_space<vmem>>, %arg6: memref<256x128xf32, #tpu.memory_space<vmem>>, %arg7: memref<256x128xf32, #tpu.memory_space<vmem>>) attributes {dimension_semantics = [#tpu.dimension_semantics<parallel>, #tpu.dimension_semantics<arbitrary>], iteration_bounds = array<i64: 1, 1>, scalar_prefetch = 0 : i64, scratch_operands = 0 : i64, tpu.core_type = #tpu.core_type<tc>, window_params = [{transform_indices = @transform_0, window_bounds = array<i64: 4>}, {transform_indices = @transform_1, window_bounds = array<i64: 256, 256>}, {transform_indices = @transform_2, window_bounds = array<i64: 256, 128>}, {transform_indices = @transform_3, window_bounds = array<i64: 256, 128>}, {transform_indices = @transform_4, window_bounds = array<i64: 256, 128>}, {transform_indices = @transform_5, window_bounds = array<i64: 256, 128>}]} {
    %c0_i32 = arith.constant 0 : i32
    %0 = arith.cmpi eq, %arg1, %c0_i32 : i32
    %1 = arith.extui %0 : i1 to i32
    %c0_i32_0 = arith.constant 0 : i32
    %2 = arith.cmpi ne, %1, %c0_i32_0 : i32
    scf.if %2 {
      %cst_10 = arith.constant 0.000000e+00 : f32
      %13 = vector.broadcast %cst_10 : f32 to vector<256x128xf32>
      %c0_11 = arith.constant 0 : index
      %c0_12 = arith.constant 0 : index
      %14 = vector.load %arg6[%c0_11, %c0_12] : memref<256x128xf32, #tpu.memory_space<vmem>>, vector<256x128xf32>
      tpu.vector_store %arg6[%c0_11, %c0_12], %13 {strides = array<i32>} : memref<256x128xf32, #tpu.memory_space<vmem>>, vector<256x128xf32>,
    } else {
    }
    %c0 = arith.constant 0 : index
    %c0_1 = arith.constant 0 : index
    %3 = vector.load %arg3[%c0, %c0_1] : memref<256x256xi8, #tpu.memory_space<vmem>>, vector<256x256xi8>
    %4 = arith.sitofp %3 : vector<256x256xi8> to vector<256x256xf32>
    %c0_2 = arith.constant 0 : index
    %c0_3 = arith.constant 0 : index
    %5 = vector.load %arg4[%c0_2, %c0_3] : memref<256x128xf32, #tpu.memory_space<vmem>>, vector<256x128xf32>
    %c0_4 = arith.constant 0 : index
    %c0_5 = arith.constant 0 : index
    %6 = vector.load %arg6[%c0_4, %c0_5] : memref<256x128xf32, #tpu.memory_space<vmem>>, vector<256x128xf32>
    %cst = arith.constant dense<0.000000e+00> : vector<256x128xf32>
    %7 = tpu.matmul %4, %5, %cst {dimension_numbers = #tpu.dot_dimension_numbers<[1], [0], [0], [1], [0, 0, 1, 1], [], []>} : vector<256x256xf32>, vector<256x128xf32>, vector<256x128xf32> -> vector<256x128xf32>
    %8 = arith.addf %6, %7 : vector<256x128xf32>
    %c0_6 = arith.constant 0 : index
    %c0_7 = arith.constant 0 : index
    %9 = vector.load %arg6[%c0_6, %c0_7] : memref<256x128xf32, #tpu.memory_space<vmem>>, vector<256x128xf32>
    tpu.vector_store %arg6[%c0_6, %c0_7], %8 {strides = array<i32>} : memref<256x128xf32, #tpu.memory_space<vmem>>, vector<256x128xf32>,
    %c0_i32_8 = arith.constant 0 : i32
    %10 = arith.cmpi eq, %arg1, %c0_i32_8 : i32
    %11 = arith.extui %10 : i1 to i32
    %c0_i32_9 = arith.constant 0 : i32
    %12 = arith.cmpi ne, %11, %c0_i32_9 : i32
    scf.if %12 {
      %c0_10 = arith.constant 0 : index
      %13 = memref.load %arg2[%c0_10] : memref<4xf32, #tpu.memory_space<smem>>
      %c1 = arith.constant 1 : index
      %14 = memref.load %arg2[%c1] : memref<4xf32, #tpu.memory_space<smem>>
      %c0_11 = arith.constant 0 : index
      %c0_12 = arith.constant 0 : index
      %15 = vector.load %arg5[%c0_11, %c0_12] : memref<256x128xf32, #tpu.memory_space<vmem>>, vector<256x128xf32>
      %16 = vector.broadcast %13 : f32 to vector<256x128xf32>
      %17 = arith.mulf %16, %15 : vector<256x128xf32>
      %c0_13 = arith.constant 0 : index
      %c0_14 = arith.constant 0 : index
      %18 = vector.load %arg6[%c0_13, %c0_14] : memref<256x128xf32, #tpu.memory_space<vmem>>, vector<256x128xf32>
      %19 = vector.broadcast %14 : f32 to vector<256x128xf32>
      %20 = arith.mulf %19, %18 : vector<256x128xf32>
      %21 = arith.addf %17, %20 : vector<256x128xf32>
      %c0_15 = arith.constant 0 : index
      %c0_16 = arith.constant 0 : index
      %22 = vector.load %arg6[%c0_15, %c0_16] : memref<256x128xf32, #tpu.memory_space<vmem>>, vector<256x128xf32>
      tpu.vector_store %arg6[%c0_15, %c0_16], %21 {strides = array<i32>} : memref<256x128xf32, #tpu.memory_space<vmem>>, vector<256x128xf32>,
      %23 = math.tanh %21 : vector<256x128xf32>
      %c0_17 = arith.constant 0 : index
      %c0_18 = arith.constant 0 : index
      %24 = vector.load %arg7[%c0_17, %c0_18] : memref<256x128xf32, #tpu.memory_space<vmem>>, vector<256x128xf32>
      tpu.vector_store %arg7[%c0_17, %c0_18], %23 {strides = array<i32>} : memref<256x128xf32, #tpu.memory_space<vmem>>, vector<256x128xf32>,
    } else {
    }
    return
  }
  func.func @transform_0(%arg0: i32, %arg1: i32) -> i32 {
    %c0_i32 = arith.constant 0 : i32
    %c0_i32_0 = arith.constant 0 : i32
    return %c0_i32 : i32
  }
  func.func @transform_1(%arg0: i32, %arg1: i32) -> (i32, i32) {
    %c0_i32 = arith.constant 0 : i32
    return %arg0, %arg1 : i32, i32
  }
  func.func @transform_2(%arg0: i32, %arg1: i32) -> (i32, i32) {
    %c0_i32 = arith.constant 0 : i32
    %c0_i32_0 = arith.constant 0 : i32
    return %arg1, %c0_i32 : i32, i32
  }
  func.func @transform_3(%arg0: i32, %arg1: i32) -> (i32, i32) {
    %c0_i32 = arith.constant 0 : i32
    %c0_i32_0 = arith.constant 0 : i32
    return %arg0, %c0_i32 : i32, i32
  }
  func.func @transform_4(%arg0: i32, %arg1: i32) -> (i32, i32) {
    %c0_i32 = arith.constant 0 : i32
    %c0_i32_0 = arith.constant 0 : i32
    return %arg0, %c0_i32 : i32, i32
  }
  func.func @transform_5(%arg0: i32, %arg1: i32) -> (i32, i32) {
    %c0_i32 = arith.constant 0 : i32
    %c0_i32_0 = arith.constant 0 : i32
    return %arg0, %c0_i32 : i32, i32
  }
}

</mosaic_0001>

<llo_original>
// kernel: tpu_custom_call.1
$region0: #{tpu_custom_call.1}
  #allocation0 [shape = 'u32[]', space=smem, size = 0x4, offset = 0x4, fixed_abs, tag = 'smem constant byte address 0x4 - core index']
  #allocation1 [shape = 'u32[72,128]{1,0:T(1,128)}', space=vmem, size = 0x9000, scoped, tag = 'internal scratch']
  %s0 = inlined_call_operand.hbm [shape: f32[4], index: 0, kind: input, shape index: {}]
  %s1 = inlined_call_operand.hbm [shape: s8[256,256], index: 1, kind: input, shape index: {}]
  %s2 = inlined_call_operand.hbm [shape: f32[256,128], index: 2, kind: input, shape index: {}]
  %s3 = inlined_call_operand.hbm [shape: f32[256,128], index: 3, kind: input, shape index: {}]
  %s4 = inlined_call_operand.hbm [shape: f32[256,128], index: 4, kind: output, shape index: {0}]
  %s5 = inlined_call_operand.hbm [shape: f32[256,128], index: 5, kind: output, shape index: {1}]
  %6 = xla_tuple %s4, %s5
  %s7 = sld [smem:[#allocation0]]
  $region58: #{tpu_custom_call.1} parent=0
    _
  %s9 = ssub.s32 1, %s7
  %s10 = scalar_select 0, %s9, %s7
  $region1: #{tpu_custom_call.1} parent=0
    #allocation2 [shape = 'u8[512]{0}', space=smem, size = 0x200, scoped, tag = 'input window, operand 0, single buffered']
    #allocation3 [shape = 's32[1]{0}', space=sflag, size = 0x4, scoped, tag = 'scoped memory for tpu_custom_call.1']
    #allocation4 [shape = 's32[1]{0}', space=sflag, size = 0x4, scoped, tag = 'scoped memory for tpu_custom_call.1']
    #allocation5 [shape = 's32[1]{0}', space=sflag, size = 0x4, scoped, tag = 'scoped memory for tpu_custom_call.1']
    #allocation6 [shape = 'u8[65536]{0}', space=vmem, size = 0x10000, scoped, tag = 'input window, operand 1, single buffered']
    #allocation7 [shape = 'u8[131072]{0}', space=vmem, size = 0x20000, scoped, tag = 'input window, operand 2, single buffered']
    #allocation8 [shape = 's32[1]{0}', space=sflag, size = 0x4, scoped, tag = 'scoped memory for tpu_custom_call.1']
    #allocation9 [shape = 'u8[131072]{0}', space=vmem, size = 0x20000, scoped, tag = 'input window, operand 3, single buffered']
    #allocation10 [shape = 'u8[131072]{0}', space=vmem, size = 0x20000, scoped, tag = 'output window, operand 0, single buffered']
    #allocation11 [shape = 'u8[131072]{0}', space=vmem, size = 0x20000, scoped, tag = 'output window, operand 1, single buffered']
    #allocation12 [shape = 's32[1]{0}', space=sflag, size = 0x4, scoped, tag = 'scoped memory for tpu_custom_call.1']
    %11 = vsyncpa [#allocation5], 0
    %12 = vsyncpa [#allocation3], 0
    %13 = vsyncpa [#allocation8], 0
    %14 = vsyncpa [#allocation4], 0
    %15 = vsyncpa [#allocation12], 0
    // Predicated region
    $region2: #{tpu_custom_call.1} parent=1 // pred_check
      _
    $region3: #{tpu_custom_call.1} parent=1 // pred_check_branch
      %17 = sbr.rel (0) target = $region5
    $region4: #{tpu_custom_call.1} parent=1 // pred_region
      %19 = vsyncadd [#allocation5], 0
      %s21 = sshll.u32 %s0, 4
      %s22 = int_to_ptr.hbm [resolvable:$true] %s21
      %24 = dma.hbm_to_smem %s22, 16, [#allocation2], [#allocation5]
    $region5: #{tpu_custom_call.1} parent=1 // pred_fallthru
      _
    // Predicated region
    $region6: #{tpu_custom_call.1} parent=1 // pred_check
      _
    $region7: #{tpu_custom_call.1} parent=1 // pred_check_branch
      %26 = sbr.rel (0) target = $region9
    $region8: #{tpu_custom_call.1} parent=1 // pred_region
      %28 = vsyncadd [#allocation3], 0
      %s29 = sshll.u32 %s1, 4
      %s30 = int_to_ptr.hbm [resolvable:$true] %s29
      %s31 = sshll.u32 [#allocation6], 4
      %s32 = int_to_ptr.vmem [resolvable:$true] %s31
      %37 = dma.hbm_to_vmem [thread:$0]  %s30, 2048, %s32, [#allocation3], 256, 256, 16
    $region9: #{tpu_custom_call.1} parent=1 // pred_fallthru
      _
    // Predicated region
    $region10: #{tpu_custom_call.1} parent=1 // pred_check
      _
    $region11: #{tpu_custom_call.1} parent=1 // pred_check_branch
      %39 = sbr.rel (0) target = $region13
    $region12: #{tpu_custom_call.1} parent=1 // pred_region
      %41 = vsyncadd [#allocation8], 0
      %s42 = sshll.u32 %s2, 4
      %s43 = int_to_ptr.hbm [resolvable:$true] %s42
      %s44 = sshll.u32 [#allocation7], 4
      %s45 = int_to_ptr.vmem [resolvable:$true] %s44
      %50 = dma.hbm_to_vmem [thread:$0]  %s43, 4096, %s45, [#allocation8], 128, 128, 8
    $region13: #{tpu_custom_call.1} parent=1 // pred_fallthru
      _
    // Predicated region
    $region14: #{tpu_custom_call.1} parent=1 // pred_check
      _
    $region15: #{tpu_custom_call.1} parent=1 // pred_check_branch
      %52 = sbr.rel (0) target = $region17
    $region16: #{tpu_custom_call.1} parent=1 // pred_region
      %54 = vsyncadd [#allocation8], 0
      %s55 = sshll.u32 %s3, 4
      %s56 = int_to_ptr.hbm [resolvable:$true] %s55
      %s57 = sshll.u32 [#allocation9], 4
      %s58 = int_to_ptr.vmem [resolvable:$true] %s57
      %63 = dma.hbm_to_vmem [thread:$0]  %s56, 4096, %s58, [#allocation8], 128, 128, 8
    $region17: #{tpu_custom_call.1} parent=1 // pred_fallthru
      _
    // Predicated region
    $region18: #{tpu_custom_call.1} parent=1 // pred_check
      _
    $region19: #{tpu_custom_call.1} parent=1 // pred_check_branch
      %65 = sbr.rel (0) target = $region21
    $region20: #{tpu_custom_call.1} parent=1 // pred_region
      %67 = dma.done [#allocation5], 16
    $region21: #{tpu_custom_call.1} parent=1 // pred_fallthru
      _
    // Predicated region
    $region22: #{tpu_custom_call.1} parent=1 // pred_check
      _
    $region23: #{tpu_custom_call.1} parent=1 // pred_check_branch
      %69 = sbr.rel (0) target = $region25
    $region24: #{tpu_custom_call.1} parent=1 // pred_region
      %71 = dma.done [#allocation3], 2048
    $region25: #{tpu_custom_call.1} parent=1 // pred_fallthru
      _
    // Predicated region
    $region26: #{tpu_custom_call.1} parent=1 // pred_check
      _
    $region27: #{tpu_custom_call.1} parent=1 // pred_check_branch
      %73 = sbr.rel (0) target = $region29
    $region28: #{tpu_custom_call.1} parent=1 // pred_region
      %75 = dma.done [#allocation8], 4096
    $region29: #{tpu_custom_call.1} parent=1 // pred_fallthru
      _
    // Predicated region
    $region30: #{tpu_custom_call.1} parent=1 // pred_check
      _
    $region31: #{tpu_custom_call.1} parent=1 // pred_check_branch
      %77 = sbr.rel (0) target = $region33
    $region32: #{tpu_custom_call.1} parent=1 // pred_region
      %79 = dma.done [#allocation8], 4096
    $region33: #{tpu_custom_call.1} parent=1 // pred_fallthru
      _
    %80 = sfence
    %p81 = scmp.eq.s32.totalorder 0, 0
    // Predicated region
    $region34: #{tpu_custom_call.1} parent=1 // pred_check
      %p82 = pneg %p81
    $region35: #{tpu_custom_call.1} parent=1 // pred_check_branch
      %84 = sbr.rel (%p82) target = $region37
    $region36: #{tpu_custom_call.1} parent=1 // pred_region
      %85 = vst [vmem:[#allocation10] sm:$0xff] 0.0
      %86 = vst [vmem:[#allocation10 + $0x8] sm:$0xff] 0.0
      %87 = vst [vmem:[#allocation10 + $0x10] sm:$0xff] 0.0
      %88 = vst [vmem:[#allocation10 + $0x18] sm:$0xff] 0.0
      %89 = vst [vmem:[#allocation10 + $0x20] sm:$0xff] 0.0
      %90 = vst [vmem:[#allocation10 + $0x28] sm:$0xff] 0.0
      %91 = vst [vmem:[#allocation10 + $0x30] sm:$0xff] 0.0
      %92 = vst [vmem:[#allocation10 + $0x38] sm:$0xff] 0.0
      %93 = vst [vmem:[#allocation10 + $0x40] sm:$0xff] 0.0
      %94 = vst [vmem:[#allocation10 + $0x48] sm:$0xff] 0.0
      %95 = vst [vmem:[#allocation10 + $0x50] sm:$0xff] 0.0
      %96 = vst [vmem:[#allocation10 + $0x58] sm:$0xff] 0.0
      %97 = vst [vmem:[#allocation10 + $0x60] sm:$0xff] 0.0
      %98 = vst [vmem:[#allocation10 + $0x68] sm:$0xff] 0.0
      %99 = vst [vmem:[#allocation10 + $0x70] sm:$0xff] 0.0
      %100 = vst [vmem:[#allocation10 + $0x78] sm:$0xff] 0.0
      %101 = vst [vmem:[#allocation10 + $0x80] sm:$0xff] 0.0
      %102 = vst [vmem:[#allocation10 + $0x88] sm:$0xff] 0.0
      %103 = vst [vmem:[#allocation10 + $0x90] sm:$0xff] 0.0
      %104 = vst [vmem:[#allocation10 + $0x98] sm:$0xff] 0.0
      %105 = vst [vmem:[#allocation10 + $0xa0] sm:$0xff] 0.0
      %106 = vst [vmem:[#allocation10 + $0xa8] sm:$0xff] 0.0
      %107 = vst [vmem:[#allocation10 + $0xb0] sm:$0xff] 0.0
      %108 = vst [vmem:[#allocation10 + $0xb8] sm:$0xff] 0.0
      %109 = vst [vmem:[#allocation10 + $0xc0] sm:$0xff] 0.0
      %110 = vst [vmem:[#allocation10 + $0xc8] sm:$0xff] 0.0
      %111 = vst [vmem:[#allocation10 + $0xd0] sm:$0xff] 0.0
      %112 = vst [vmem:[#allocation10 + $0xd8] sm:$0xff] 0.0
      %113 = vst [vmem:[#allocation10 + $0xe0] sm:$0xff] 0.0
      %114 = vst [vmem:[#allocation10 + $0xe8] sm:$0xff] 0.0
      %115 = vst [vmem:[#allocation10 + $0xf0] sm:$0xff] 0.0
      %116 = vst [vmem:[#allocation10 + $0xf8] sm:$0xff] 0.0
    $region37: #{tpu_custom_call.1} parent=1 // pred_fallthru
      _
    %v117 = vld [vmem:[#allocation6] sm:$0xff]
    %v118 = vld [vmem:[#allocation6 + $0x8] sm:$0xff]
    %v119 = vld [vmem:[#allocation6 + $0x10] sm:$0xff]
    %v120 = vld [vmem:[#allocation6 + $0x18] sm:$0xff]
    %v121 = vld [vmem:[#allocation6 + $0x20] sm:$0xff]
    %v122 = vld [vmem:[#allocation6 + $0x28] sm:$0xff]
    %v123 = vld [vmem:[#allocation6 + $0x30] sm:$0xff]
    %v124 = vld [vmem:[#allocation6 + $0x38] sm:$0xff]
    %v125 = vld [vmem:[#allocation6 + $0x40] sm:$0xff]
    %v126 = vld [vmem:[#allocation6 + $0x48] sm:$0xff]
    %v127 = vld [vmem:[#allocation6 + $0x50] sm:$0xff]
    %v128 = vld [vmem:[#allocation6 + $0x58] sm:$0xff]
    %v129 = vld [vmem:[#allocation6 + $0x60] sm:$0xff]
    %v130 = vld [vmem:[#allocation6 + $0x68] sm:$0xff]
    %v131 = vld [vmem:[#allocation6 + $0x70] sm:$0xff]
    %v132 = vld [vmem:[#allocation6 + $0x78] sm:$0xff]
    %v133 = vunpack.c.0.s8 %v117
    %v134 = vunpack.c.0.s8 %v118
    %v135 = vunpack.c.1.s8 %v117
    %v136 = vunpack.c.1.s8 %v118
    %v137 = vunpack.c.2.s8 %v117
    %v138 = vunpack.c.2.s8 %v118
    %v139 = vunpack.c.3.s8 %v117
    %v140 = vunpack.c.3.s8 %v118
    %v141 = vunpack.c.0.s8 %v119
    %v142 = vunpack.c.0.s8 %v120
    %v143 = vunpack.c.1.s8 %v119
    %v144 = vunpack.c.1.s8 %v120
    %v145 = vunpack.c.2.s8 %v119
    %v146 = vunpack.c.2.s8 %v120
    %v147 = vunpack.c.3.s8 %v119
    %v148 = vunpack.c.3.s8 %v120
    %v149 = vunpack.c.0.s8 %v121
    %v150 = vunpack.c.0.s8 %v122
    %v151 = vunpack.c.1.s8 %v121
    %v152 = vunpack.c.1.s8 %v122
    %v153 = vunpack.c.2.s8 %v121
    %v154 = vunpack.c.2.s8 %v122
    %v155 = vunpack.c.3.s8 %v121
    %v156 = vunpack.c.3.s8 %v122
    %v157 = vunpack.c.0.s8 %v123
    %v158 = vunpack.c.0.s8 %v124
    %v159 = vunpack.c.1.s8 %v123
    %v160 = vunpack.c.1.s8 %v124
    %v161 = vunpack.c.2.s8 %v123
    %v162 = vunpack.c.2.s8 %v124
    %v163 = vunpack.c.3.s8 %v123
    %v164 = vunpack.c.3.s8 %v124
    %v165 = vunpack.c.0.s8 %v125
    %v166 = vunpack.c.0.s8 %v126
    %v167 = vunpack.c.1.s8 %v125
    %v168 = vunpack.c.1.s8 %v126
    %v169 = vunpack.c.2.s8 %v125
    %v170 = vunpack.c.2.s8 %v126
    %v171 = vunpack.c.3.s8 %v125
    %v172 = vunpack.c.3.s8 %v126
    %v173 = vunpack.c.0.s8 %v127
    %v174 = vunpack.c.0.s8 %v128
    %v175 = vunpack.c.1.s8 %v127
    %v176 = vunpack.c.1.s8 %v128
    %v177 = vunpack.c.2.s8 %v127
    %v178 = vunpack.c.2.s8 %v128
    %v179 = vunpack.c.3.s8 %v127
    %v180 = vunpack.c.3.s8 %v128
    %v181 = vunpack.c.0.s8 %v129
    %v182 = vunpack.c.0.s8 %v130
    %v183 = vunpack.c.1.s8 %v129
    %v184 = vunpack.c.1.s8 %v130
    %v185 = vunpack.c.2.s8 %v129
    %v186 = vunpack.c.2.s8 %v130
    %v187 = vunpack.c.3.s8 %v129
    %v188 = vunpack.c.3.s8 %v130
    %v189 = vunpack.c.0.s8 %v131
    %v190 = vunpack.c.0.s8 %v132
    %v191 = vunpack.c.1.s8 %v131
    %v192 = vunpack.c.1.s8 %v132
    %v193 = vunpack.c.2.s8 %v131
    %v194 = vunpack.c.2.s8 %v132
    %v195 = vunpack.c.3.s8 %v131
    %v196 = vunpack.c.3.s8 %v132
    %v197 = vcvt.s32.f32 %v133
    %v198 = vcvt.s32.f32 %v134
    %v199 = vcvt.s32.f32 %v135
    %v200 = vcvt.s32.f32 %v136
    %v201 = vcvt.s32.f32 %v137
    %v202 = vcvt.s32.f32 %v138
    %v203 = vcvt.s32.f32 %v139
    %v204 = vcvt.s32.f32 %v140
    %v205 = vcvt.s32.f32 %v141
    %v206 = vcvt.s32.f32 %v142
    %v207 = vcvt.s32.f32 %v143
    %v208 = vcvt.s32.f32 %v144
    %v209 = vcvt.s32.f32 %v145
    %v210 = vcvt.s32.f32 %v146
    %v211 = vcvt.s32.f32 %v147
    %v212 = vcvt.s32.f32 %v148
    %v213 = vcvt.s32.f32 %v149
    %v214 = vcvt.s32.f32 %v150
    %v215 = vcvt.s32.f32 %v151
    %v216 = vcvt.s32.f32 %v152
    %v217 = vcvt.s32.f32 %v153
    %v218 = vcvt.s32.f32 %v154
    %v219 = vcvt.s32.f32 %v155
    %v220 = vcvt.s32.f32 %v156
    %v221 = vcvt.s32.f32 %v157
    %v222 = vcvt.s32.f32 %v158
    %v223 = vcvt.s32.f32 %v159
    %v224 = vcvt.s32.f32 %v160
    %v225 = vcvt.s32.f32 %v161
    %v226 = vcvt.s32.f32 %v162
    %v227 = vcvt.s32.f32 %v163
    %v228 = vcvt.s32.f32 %v164
    %v229 = vcvt.s32.f32 %v165
    %v230 = vcvt.s32.f32 %v166
    %v231 = vcvt.s32.f32 %v167
    %v232 = vcvt.s32.f32 %v168
    %v233 = vcvt.s32.f32 %v169
    %v234 = vcvt.s32.f32 %v170
    %v235 = vcvt.s32.f32 %v171
    %v236 = vcvt.s32.f32 %v172
    %v237 = vcvt.s32.f32 %v173
    %v238 = vcvt.s32.f32 %v174
    %v239 = vcvt.s32.f32 %v175
    %v240 = vcvt.s32.f32 %v176
    %v241 = vcvt.s32.f32 %v177
    %v242 = vcvt.s32.f32 %v178
    %v243 = vcvt.s32.f32 %v179
    %v244 = vcvt.s32.f32 %v180
    %v245 = vcvt.s32.f32 %v181
    %v246 = vcvt.s32.f32 %v182
    %v247 = vcvt.s32.f32 %v183
    %v248 = vcvt.s32.f32 %v184
    %v249 = vcvt.s32.f32 %v185
    %v250 = vcvt.s32.f32 %v186
    %v251 = vcvt.s32.f32 %v187
    %v252 = vcvt.s32.f32 %v188
    %v253 = vcvt.s32.f32 %v189
    %v254 = vcvt.s32.f32 %v190
    %v255 = vcvt.s32.f32 %v191
    %v256 = vcvt.s32.f32 %v192
    %v257 = vcvt.s32.f32 %v193
    %v258 = vcvt.s32.f32 %v194
    %v259 = vcvt.s32.f32 %v195
    %v260 = vcvt.s32.f32 %v196
    %v261 = vld [vmem:[#allocation7] sm:$0xff]
    %v262 = vld [vmem:[#allocation7 + $0x8] sm:$0xff]
    %v263 = vld [vmem:[#allocation7 + $0x10] sm:$0xff]
    %v264 = vld [vmem:[#allocation7 + $0x18] sm:$0xff]
    %v265 = vld [vmem:[#allocation7 + $0x20] sm:$0xff]
    %v266 = vld [vmem:[#allocation7 + $0x28] sm:$0xff]
    %v267 = vld [vmem:[#allocation7 + $0x30] sm:$0xff]
    %v268 = vld [vmem:[#allocation7 + $0x38] sm:$0xff]
    %v269 = vld [vmem:[#allocation7 + $0x40] sm:$0xff]
    %v270 = vld [vmem:[#allocation7 + $0x48] sm:$0xff]
    %v271 = vld [vmem:[#allocation7 + $0x50] sm:$0xff]
    %v272 = vld [vmem:[#allocation7 + $0x58] sm:$0xff]
    %v273 = vld [vmem:[#allocation7 + $0x60] sm:$0xff]
    %v274 = vld [vmem:[#allocation7 + $0x68] sm:$0xff]
    %v275 = vld [vmem:[#allocation7 + $0x70] sm:$0xff]
    %v276 = vld [vmem:[#allocation7 + $0x78] sm:$0xff]
    %v277 = vld [vmem:[#allocation7 + $0x80] sm:$0xff]
    %v278 = vld [vmem:[#allocation7 + $0x88] sm:$0xff]
    %v279 = vld [vmem:[#allocation7 + $0x90] sm:$0xff]
    %v280 = vld [vmem:[#allocation7 + $0x98] sm:$0xff]
    %v281 = vld [vmem:[#allocation7 + $0xa0] sm:$0xff]
    %v282 = vld [vmem:[#allocation7 + $0xa8] sm:$0xff]
    %v283 = vld [vmem:[#allocation7 + $0xb0] sm:$0xff]
    %v284 = vld [vmem:[#allocation7 + $0xb8] sm:$0xff]
    %v285 = vld [vmem:[#allocation7 + $0xc0] sm:$0xff]
    %v286 = vld [vmem:[#allocation7 + $0xc8] sm:$0xff]
    %v287 = vld [vmem:[#allocation7 + $0xd0] sm:$0xff]
    %v288 = vld [vmem:[#allocation7 + $0xd8] sm:$0xff]
    %v289 = vld [vmem:[#allocation7 + $0xe0] sm:$0xff]
    %v290 = vld [vmem:[#allocation7 + $0xe8] sm:$0xff]
    %v291 = vld [vmem:[#allocation7 + $0xf0] sm:$0xff]
    %v292 = vld [vmem:[#allocation7 + $0xf8] sm:$0xff]
    %v293 = vld [vmem:[#allocation10] sm:$0xff]
    %v294 = vld [vmem:[#allocation10 + $0x8] sm:$0xff]
    %v295 = vld [vmem:[#allocation10 + $0x10] sm:$0xff]
    %v296 = vld [vmem:[#allocation10 + $0x18] sm:$0xff]
    %v297 = vld [vmem:[#allocation10 + $0x20] sm:$0xff]
    %v298 = vld [vmem:[#allocation10 + $0x28] sm:$0xff]
    %v299 = vld [vmem:[#allocation10 + $0x30] sm:$0xff]
    %v300 = vld [vmem:[#allocation10 + $0x38] sm:$0xff]
    %v301 = vld [vmem:[#allocation10 + $0x40] sm:$0xff]
    %v302 = vld [vmem:[#allocation10 + $0x48] sm:$0xff]
    %v303 = vld [vmem:[#allocation10 + $0x50] sm:$0xff]
    %v304 = vld [vmem:[#allocation10 + $0x58] sm:$0xff]
    %v305 = vld [vmem:[#allocation10 + $0x60] sm:$0xff]
    %v306 = vld [vmem:[#allocation10 + $0x68] sm:$0xff]
    %v307 = vld [vmem:[#allocation10 + $0x70] sm:$0xff]
    %v308 = vld [vmem:[#allocation10 + $0x78] sm:$0xff]
    %v309 = vld [vmem:[#allocation10 + $0x80] sm:$0xff]
    %v310 = vld [vmem:[#allocation10 + $0x88] sm:$0xff]
    %v311 = vld [vmem:[#allocation10 + $0x90] sm:$0xff]
    %v312 = vld [vmem:[#allocation10 + $0x98] sm:$0xff]
    %v313 = vld [vmem:[#allocation10 + $0xa0] sm:$0xff]
    %v314 = vld [vmem:[#allocation10 + $0xa8] sm:$0xff]
    %v315 = vld [vmem:[#allocation10 + $0xb0] sm:$0xff]
    %v316 = vld [vmem:[#allocation10 + $0xb8] sm:$0xff]
    %v317 = vld [vmem:[#allocation10 + $0xc0] sm:$0xff]
    %v318 = vld [vmem:[#allocation10 + $0xc8] sm:$0xff]
    %v319 = vld [vmem:[#allocation10 + $0xd0] sm:$0xff]
    %v320 = vld [vmem:[#allocation10 + $0xd8] sm:$0xff]
    %v321 = vld [vmem:[#allocation10 + $0xe0] sm:$0xff]
    %v322 = vld [vmem:[#allocation10 + $0xe8] sm:$0xff]
    %v323 = vld [vmem:[#allocation10 + $0xf0] sm:$0xff]
    %v324 = vld [vmem:[#allocation10 + $0xf8] sm:$0xff]
    %325 = vmatpush.msra.mxu0 %v276
    %326 = vmatpush.msra.mxu0 %v275
    %327 = vmatpush.msra.mxu0 %v274
    %328 = vmatpush.msra.mxu0 %v273
    %329 = vmatpush.msra.mxu0 %v272
    %330 = vmatpush.msra.mxu0 %v271
    %331 = vmatpush.msra.mxu0 %v270
    %332 = vmatpush.msra.mxu0 %v269
    %333 = vmatpush.msra.mxu0 %v268
    %334 = vmatpush.msra.mxu0 %v267
    %335 = vmatpush.msra.mxu0 %v266
    %336 = vmatpush.msra.mxu0 %v265
    %337 = vmatpush.msra.mxu0 %v264
    %338 = vmatpush.msra.mxu0 %v263
    %339 = vmatpush.msra.mxu0 %v262
    %340 = vmatpush.msra.mxu0 %v261
    %341 = vmatmul.f32.gmra.mxu0 %v197
    %v342 = vpop.f32.mrf.mxu0
    %v343 = vadd.f32 0.0, %v342
    %344 = vmatmul.f32.gmra.mxu0 %v199
    %v345 = vpop.f32.mrf.mxu0
    %v346 = vadd.f32 0.0, %v345
    %347 = vmatmul.f32.gmra.mxu0 %v201
    %v348 = vpop.f32.mrf.mxu0
    %v349 = vadd.f32 0.0, %v348
    %350 = vmatmul.f32.gmra.mxu0 %v203
    %v351 = vpop.f32.mrf.mxu0
    %v352 = vadd.f32 0.0, %v351
    %353 = vmatmul.f32.gmra.mxu0 %v205
    %v354 = vpop.f32.mrf.mxu0
    %v355 = vadd.f32 0.0, %v354
    %356 = vmatmul.f32.gmra.mxu0 %v207
    %v357 = vpop.f32.mrf.mxu0
    %v358 = vadd.f32 0.0, %v357
    %359 = vmatmul.f32.gmra.mxu0 %v209
    %v360 = vpop.f32.mrf.mxu0
    %v361 = vadd.f32 0.0, %v360
    %362 = vmatmul.f32.gmra.mxu0 %v211
    %v363 = vpop.f32.mrf.mxu0
    %v364 = vadd.f32 0.0, %v363
    %365 = vmatmul.f32.gmra.mxu0 %v213
    %v366 = vpop.f32.mrf.mxu0
    %v367 = vadd.f32 0.0, %v366
    %368 = vmatmul.f32.gmra.mxu0 %v215
    %v369 = vpop.f32.mrf.mxu0
    %v370 = vadd.f32 0.0, %v369
    %371 = vmatmul.f32.gmra.mxu0 %v217
    %v372 = vpop.f32.mrf.mxu0
    %v373 = vadd.f32 0.0, %v372
    %374 = vmatmul.f32.gmra.mxu0 %v219
    %v375 = vpop.f32.mrf.mxu0
    %v376 = vadd.f32 0.0, %v375
    %377 = vmatmul.f32.gmra.mxu0 %v221
    %v378 = vpop.f32.mrf.mxu0
    %v379 = vadd.f32 0.0, %v378
    %380 = vmatmul.f32.gmra.mxu0 %v223
    %v381 = vpop.f32.mrf.mxu0
    %v382 = vadd.f32 0.0, %v381
    %383 = vmatmul.f32.gmra.mxu0 %v225
    %v384 = vpop.f32.mrf.mxu0
    %v385 = vadd.f32 0.0, %v384
    %386 = vmatmul.f32.gmra.mxu0 %v227
    %v387 = vpop.f32.mrf.mxu0
    %v388 = vadd.f32 0.0, %v387
    %389 = vmatmul.f32.gmra.mxu0 %v229
    %v390 = vpop.f32.mrf.mxu0
    %v391 = vadd.f32 0.0, %v390
    %392 = vmatmul.f32.gmra.mxu0 %v231
    %v393 = vpop.f32.mrf.mxu0
    %v394 = vadd.f32 0.0, %v393
    %395 = vmatmul.f32.gmra.mxu0 %v233
    %v396 = vpop.f32.mrf.mxu0
    %v397 = vadd.f32 0.0, %v396
    %398 = vmatmul.f32.gmra.mxu0 %v235
    %v399 = vpop.f32.mrf.mxu0
    %v400 = vadd.f32 0.0, %v399
    %401 = vmatmul.f32.gmra.mxu0 %v237
    %v402 = vpop.f32.mrf.mxu0
    %v403 = vadd.f32 0.0, %v402
    %404 = vmatmul.f32.gmra.mxu0 %v239
    %v405 = vpop.f32.mrf.mxu0
    %v406 = vadd.f32 0.0, %v405
    %407 = vmatmul.f32.gmra.mxu0 %v241
    %v408 = vpop.f32.mrf.mxu0
    %v409 = vadd.f32 0.0, %v408
    %410 = vmatmul.f32.gmra.mxu0 %v243
    %v411 = vpop.f32.mrf.mxu0
    %v412 = vadd.f32 0.0, %v411
    %413 = vmatmul.f32.gmra.mxu0 %v245
    %v414 = vpop.f32.mrf.mxu0
    %v415 = vadd.f32 0.0, %v414
    %416 = vmatmul.f32.gmra.mxu0 %v247
    %v417 = vpop.f32.mrf.mxu0
    %v418 = vadd.f32 0.0, %v417
    %419 = vmatmul.f32.gmra.mxu0 %v249
    %v420 = vpop.f32.mrf.mxu0
    %v421 = vadd.f32 0.0, %v420
    %422 = vmatmul.f32.gmra.mxu0 %v251
    %v423 = vpop.f32.mrf.mxu0
    %v424 = vadd.f32 0.0, %v423
    %425 = vmatmul.f32.gmra.mxu0 %v253
    %v426 = vpop.f32.mrf.mxu0
    %v427 = vadd.f32 0.0, %v426
    %428 = vmatmul.f32.gmra.mxu0 %v255
    %v429 = vpop.f32.mrf.mxu0
    %v430 = vadd.f32 0.0, %v429
    %431 = vmatmul.f32.gmra.mxu0 %v257
    %v432 = vpop.f32.mrf.mxu0
    %v433 = vadd.f32 0.0, %v432
    %434 = vmatmul.f32.gmra.mxu0 %v259
    %v435 = vpop.f32.mrf.mxu0
    %v436 = vadd.f32 0.0, %v435
    %437 = vdwg.mxu0
    %438 = vmatpush.msra.mxu0 %v292
    %439 = vmatpush.msra.mxu0 %v291
    %440 = vmatpush.msra.mxu0 %v290
    %441 = vmatpush.msra.mxu0 %v289
    %442 = vmatpush.msra.mxu0 %v288
    %443 = vmatpush.msra.mxu0 %v287
    %444 = vmatpush.msra.mxu0 %v286
    %445 = vmatpush.msra.mxu0 %v285
    %446 = vmatpush.msra.mxu0 %v284
    %447 = vmatpush.msra.mxu0 %v283
    %448 = vmatpush.msra.mxu0 %v282
    %449 = vmatpush.msra.mxu0 %v281
    %450 = vmatpush.msra.mxu0 %v280
    %451 = vmatpush.msra.mxu0 %v279
    %452 = vmatpush.msra.mxu0 %v278
    %453 = vmatpush.msra.mxu0 %v277
    %454 = vmatmul.f32.gmra.mxu0 %v198
    %v455 = vpop.f32.mrf.mxu0
    %v456 = vadd.f32 %v343, %v455
    %457 = vmatmul.f32.gmra.mxu0 %v200
    %v458 = vpop.f32.mrf.mxu0
    %v459 = vadd.f32 %v346, %v458
    %460 = vmatmul.f32.gmra.mxu0 %v202
    %v461 = vpop.f32.mrf.mxu0
    %v462 = vadd.f32 %v349, %v461
    %463 = vmatmul.f32.gmra.mxu0 %v204
    %v464 = vpop.f32.mrf.mxu0
    %v465 = vadd.f32 %v352, %v464
    %466 = vmatmul.f32.gmra.mxu0 %v206
    %v467 = vpop.f32.mrf.mxu0
    %v468 = vadd.f32 %v355, %v467
    %469 = vmatmul.f32.gmra.mxu0 %v208
    %v470 = vpop.f32.mrf.mxu0
    %v471 = vadd.f32 %v358, %v470
    %472 = vmatmul.f32.gmra.mxu0 %v210
    %v473 = vpop.f32.mrf.mxu0
    %v474 = vadd.f32 %v361, %v473
    %475 = vmatmul.f32.gmra.mxu0 %v212
    %v476 = vpop.f32.mrf.mxu0
    %v477 = vadd.f32 %v364, %v476
    %478 = vmatmul.f32.gmra.mxu0 %v214
    %v479 = vpop.f32.mrf.mxu0
    %v480 = vadd.f32 %v367, %v479
    %481 = vmatmul.f32.gmra.mxu0 %v216
    %v482 = vpop.f32.mrf.mxu0
    %v483 = vadd.f32 %v370, %v482
    %484 = vmatmul.f32.gmra.mxu0 %v218
    %v485 = vpop.f32.mrf.mxu0
    %v486 = vadd.f32 %v373, %v485
    %487 = vmatmul.f32.gmra.mxu0 %v220
    %v488 = vpop.f32.mrf.mxu0
    %v489 = vadd.f32 %v376, %v488
    %490 = vmatmul.f32.gmra.mxu0 %v222
    %v491 = vpop.f32.mrf.mxu0
    %v492 = vadd.f32 %v379, %v491
    %493 = vmatmul.f32.gmra.mxu0 %v224
    %v494 = vpop.f32.mrf.mxu0
    %v495 = vadd.f32 %v382, %v494
    %496 = vmatmul.f32.gmra.mxu0 %v226
    %v497 = vpop.f32.mrf.mxu0
    %v498 = vadd.f32 %v385, %v497
    %499 = vmatmul.f32.gmra.mxu0 %v228
    %v500 = vpop.f32.mrf.mxu0
    %v501 = vadd.f32 %v388, %v500
    %502 = vmatmul.f32.gmra.mxu0 %v230
    %v503 = vpop.f32.mrf.mxu0
    %v504 = vadd.f32 %v391, %v503
    %505 = vmatmul.f32.gmra.mxu0 %v232
    %v506 = vpop.f32.mrf.mxu0
    %v507 = vadd.f32 %v394, %v506
    %508 = vmatmul.f32.gmra.mxu0 %v234
    %v509 = vpop.f32.mrf.mxu0
    %v510 = vadd.f32 %v397, %v509
    %511 = vmatmul.f32.gmra.mxu0 %v236
    %v512 = vpop.f32.mrf.mxu0
    %v513 = vadd.f32 %v400, %v512
    %514 = vmatmul.f32.gmra.mxu0 %v238
    %v515 = vpop.f32.mrf.mxu0
    %v516 = vadd.f32 %v403, %v515
    %517 = vmatmul.f32.gmra.mxu0 %v240
    %v518 = vpop.f32.mrf.mxu0
    %v519 = vadd.f32 %v406, %v518
    %520 = vmatmul.f32.gmra.mxu0 %v242
    %v521 = vpop.f32.mrf.mxu0
    %v522 = vadd.f32 %v409, %v521
    %523 = vmatmul.f32.gmra.mxu0 %v244
    %v524 = vpop.f32.mrf.mxu0
    %v525 = vadd.f32 %v412, %v524
    %526 = vmatmul.f32.gmra.mxu0 %v246
    %v527 = vpop.f32.mrf.mxu0
    %v528 = vadd.f32 %v415, %v527
    %529 = vmatmul.f32.gmra.mxu0 %v248
    %v530 = vpop.f32.mrf.mxu0
    %v531 = vadd.f32 %v418, %v530
    %532 = vmatmul.f32.gmra.mxu0 %v250
    %v533 = vpop.f32.mrf.mxu0
    %v534 = vadd.f32 %v421, %v533
    %535 = vmatmul.f32.gmra.mxu0 %v252
    %v536 = vpop.f32.mrf.mxu0
    %v537 = vadd.f32 %v424, %v536
    %538 = vmatmul.f32.gmra.mxu0 %v254
    %v539 = vpop.f32.mrf.mxu0
    %v540 = vadd.f32 %v427, %v539
    %541 = vmatmul.f32.gmra.mxu0 %v256
    %v542 = vpop.f32.mrf.mxu0
    %v543 = vadd.f32 %v430, %v542
    %544 = vmatmul.f32.gmra.mxu0 %v258
    %v545 = vpop.f32.mrf.mxu0
    %v546 = vadd.f32 %v433, %v545
    %547 = vmatmul.f32.gmra.mxu0 %v260
    %v548 = vpop.f32.mrf.mxu0
    %v549 = vadd.f32 %v436, %v548
    %550 = vdwg.mxu0
    %v551 = vadd.f32 %v293, %v456
    %v552 = vadd.f32 %v294, %v459
    %v553 = vadd.f32 %v295, %v462
    %v554 = vadd.f32 %v296, %v465
    %v555 = vadd.f32 %v297, %v468
    %v556 = vadd.f32 %v298, %v471
    %v557 = vadd.f32 %v299, %v474
    %v558 = vadd.f32 %v300, %v477
    %v559 = vadd.f32 %v301, %v480
    %v560 = vadd.f32 %v302, %v483
    %v561 = vadd.f32 %v303, %v486
    %v562 = vadd.f32 %v304, %v489
    %v563 = vadd.f32 %v305, %v492
    %v564 = vadd.f32 %v306, %v495
    %v565 = vadd.f32 %v307, %v498
    %v566 = vadd.f32 %v308, %v501
    %v567 = vadd.f32 %v309, %v504
    %v568 = vadd.f32 %v310, %v507
    %v569 = vadd.f32 %v311, %v510
    %v570 = vadd.f32 %v312, %v513
    %v571 = vadd.f32 %v313, %v516
    %v572 = vadd.f32 %v314, %v519
    %v573 = vadd.f32 %v315, %v522
    %v574 = vadd.f32 %v316, %v525
    %v575 = vadd.f32 %v317, %v528
    %v576 = vadd.f32 %v318, %v531
    %v577 = vadd.f32 %v319, %v534
    %v578 = vadd.f32 %v320, %v537
    %v579 = vadd.f32 %v321, %v540
    %v580 = vadd.f32 %v322, %v543
    %v581 = vadd.f32 %v323, %v546
    %v582 = vadd.f32 %v324, %v549
    %583 = vst [vmem:[#allocation10] sm:$0xff] %v551
    %584 = vst [vmem:[#allocation10 + $0x8] sm:$0xff] %v552
    %585 = vst [vmem:[#allocation10 + $0x10] sm:$0xff] %v553
    %586 = vst [vmem:[#allocation10 + $0x18] sm:$0xff] %v554
    %587 = vst [vmem:[#allocation10 + $0x20] sm:$0xff] %v555
    %588 = vst [vmem:[#allocation10 + $0x28] sm:$0xff] %v556
    %589 = vst [vmem:[#allocation10 + $0x30] sm:$0xff] %v557
    %590 = vst [vmem:[#allocation10 + $0x38] sm:$0xff] %v558
    %591 = vst [vmem:[#allocation10 + $0x40] sm:$0xff] %v559
    %592 = vst [vmem:[#allocation10 + $0x48] sm:$0xff] %v560
    %593 = vst [vmem:[#allocation10 + $0x50] sm:$0xff] %v561
    %594 = vst [vmem:[#allocation10 + $0x58] sm:$0xff] %v562
    %595 = vst [vmem:[#allocation10 + $0x60] sm:$0xff] %v563
    %596 = vst [vmem:[#allocation10 + $0x68] sm:$0xff] %v564
    %597 = vst [vmem:[#allocation10 + $0x70] sm:$0xff] %v565
    %598 = vst [vmem:[#allocation10 + $0x78] sm:$0xff] %v566
    %599 = vst [vmem:[#allocation10 + $0x80] sm:$0xff] %v567
    %600 = vst [vmem:[#allocation10 + $0x88] sm:$0xff] %v568
    %601 = vst [vmem:[#allocation10 + $0x90] sm:$0xff] %v569
    %602 = vst [vmem:[#allocation10 + $0x98] sm:$0xff] %v570
    %603 = vst [vmem:[#allocation10 + $0xa0] sm:$0xff] %v571
    %604 = vst [vmem:[#allocation10 + $0xa8] sm:$0xff] %v572
    %605 = vst [vmem:[#allocation10 + $0xb0] sm:$0xff] %v573
    %606 = vst [vmem:[#allocation10 + $0xb8] sm:$0xff] %v574
    %607 = vst [vmem:[#allocation10 + $0xc0] sm:$0xff] %v575
    %608 = vst [vmem:[#allocation10 + $0xc8] sm:$0xff] %v576
    %609 = vst [vmem:[#allocation10 + $0xd0] sm:$0xff] %v577
    %610 = vst [vmem:[#allocation10 + $0xd8] sm:$0xff] %v578
    %611 = vst [vmem:[#allocation10 + $0xe0] sm:$0xff] %v579
    %612 = vst [vmem:[#allocation10 + $0xe8] sm:$0xff] %v580
    %613 = vst [vmem:[#allocation10 + $0xf0] sm:$0xff] %v581
    %614 = vst [vmem:[#allocation10 + $0xf8] sm:$0xff] %v582
    // Predicated region
    $region38: #{tpu_custom_call.1} parent=1 // pred_check
      %p615 = pneg %p81
    $region39: #{tpu_custom_call.1} parent=1 // pred_check_branch
      %617 = sbr.rel (%p615) target = $region41
    $region40: #{tpu_custom_call.1} parent=1 // pred_region
      %s618 = sld [smem:[#allocation2]]
      %s619 = sld [smem:[#allocation2 + $0x1]]
      %v620 = vld [vmem:[#allocation9] sm:$0xff]
      %v621 = vld [vmem:[#allocation9 + $0x8] sm:$0xff]
      %v622 = vld [vmem:[#allocation9 + $0x10] sm:$0xff]
      %v623 = vld [vmem:[#allocation9 + $0x18] sm:$0xff]
      %v624 = vld [vmem:[#allocation9 + $0x20] sm:$0xff]
      %v625 = vld [vmem:[#allocation9 + $0x28] sm:$0xff]
      %v626 = vld [vmem:[#allocation9 + $0x30] sm:$0xff]
      %v627 = vld [vmem:[#allocation9 + $0x38] sm:$0xff]
      %v628 = vld [vmem:[#allocation9 + $0x40] sm:$0xff]
      %v629 = vld [vmem:[#allocation9 + $0x48] sm:$0xff]
      %v630 = vld [vmem:[#allocation9 + $0x50] sm:$0xff]
      %v631 = vld [vmem:[#allocation9 + $0x58] sm:$0xff]
      %v632 = vld [vmem:[#allocation9 + $0x60] sm:$0xff]
      %v633 = vld [vmem:[#allocation9 + $0x68] sm:$0xff]
      %v634 = vld [vmem:[#allocation9 + $0x70] sm:$0xff]
      %v635 = vld [vmem:[#allocation9 + $0x78] sm:$0xff]
      %v636 = vld [vmem:[#allocation9 + $0x80] sm:$0xff]
      %v637 = vld [vmem:[#allocation9 + $0x88] sm:$0xff]
      %v638 = vld [vmem:[#allocation9 + $0x90] sm:$0xff]
      %v639 = vld [vmem:[#allocation9 + $0x98] sm:$0xff]
      %v640 = vld [vmem:[#allocation9 + $0xa0] sm:$0xff]
      %v641 = vld [vmem:[#allocation9 + $0xa8] sm:$0xff]
      %v642 = vld [vmem:[#allocation9 + $0xb0] sm:$0xff]
      %v643 = vld [vmem:[#allocation9 + $0xb8] sm:$0xff]
      %v644 = vld [vmem:[#allocation9 + $0xc0] sm:$0xff]
      %v645 = vld [vmem:[#allocation9 + $0xc8] sm:$0xff]
      %v646 = vld [vmem:[#allocation9 + $0xd0] sm:$0xff]
      %v647 = vld [vmem:[#allocation9 + $0xd8] sm:$0xff]
      %v648 = vld [vmem:[#allocation9 + $0xe0] sm:$0xff]
      %v649 = vld [vmem:[#allocation9 + $0xe8] sm:$0xff]
      %v650 = vld [vmem:[#allocation9 + $0xf0] sm:$0xff]
      %v651 = vld [vmem:[#allocation9 + $0xf8] sm:$0xff]
      %v652 = vstv %s618
      %v653 = vmul.f32 %v652, %v620
      %v654 = vmul.f32 %v652, %v621
      %v655 = vmul.f32 %v652, %v622
      %v656 = vmul.f32 %v652, %v623
      %v657 = vmul.f32 %v652, %v624
      %v658 = vmul.f32 %v652, %v625
      %v659 = vmul.f32 %v652, %v626
      %v660 = vmul.f32 %v652, %v627
      %v661 = vmul.f32 %v652, %v628
      %v662 = vmul.f32 %v652, %v629
      %v663 = vmul.f32 %v652, %v630
      %v664 = vmul.f32 %v652, %v631
      %v665 = vmul.f32 %v652, %v632
      %v666 = vmul.f32 %v652, %v633
      %v667 = vmul.f32 %v652, %v634
      %v668 = vmul.f32 %v652, %v635
      %v669 = vmul.f32 %v652, %v636
      %v670 = vmul.f32 %v652, %v637
      %v671 = vmul.f32 %v652, %v638
      %v672 = vmul.f32 %v652, %v639
      %v673 = vmul.f32 %v652, %v640
      %v674 = vmul.f32 %v652, %v641
      %v675 = vmul.f32 %v652, %v642
      %v676 = vmul.f32 %v652, %v643
      %v677 = vmul.f32 %v652, %v644
      %v678 = vmul.f32 %v652, %v645
      %v679 = vmul.f32 %v652, %v646
      %v680 = vmul.f32 %v652, %v647
      %v681 = vmul.f32 %v652, %v648
      %v682 = vmul.f32 %v652, %v649
      %v683 = vmul.f32 %v652, %v650
      %v684 = vmul.f32 %v652, %v651
      %v685 = vld [vmem:[#allocation10] sm:$0xff]
      %v686 = vld [vmem:[#allocation10 + $0x8] sm:$0xff]
      %v687 = vld [vmem:[#allocation10 + $0x10] sm:$0xff]
      %v688 = vld [vmem:[#allocation10 + $0x18] sm:$0xff]
      %v689 = vld [vmem:[#allocation10 + $0x20] sm:$0xff]
      %v690 = vld [vmem:[#allocation10 + $0x28] sm:$0xff]
      %v691 = vld [vmem:[#allocation10 + $0x30] sm:$0xff]
      %v692 = vld [vmem:[#allocation10 + $0x38] sm:$0xff]
      %v693 = vld [vmem:[#allocation10 + $0x40] sm:$0xff]
      %v694 = vld [vmem:[#allocation10 + $0x48] sm:$0xff]
      %v695 = vld [vmem:[#allocation10 + $0x50] sm:$0xff]
      %v696 = vld [vmem:[#allocation10 + $0x58] sm:$0xff]
      %v697 = vld [vmem:[#allocation10 + $0x60] sm:$0xff]
      %v698 = vld [vmem:[#allocation10 + $0x68] sm:$0xff]
      %v699 = vld [vmem:[#allocation10 + $0x70] sm:$0xff]
      %v700 = vld [vmem:[#allocation10 + $0x78] sm:$0xff]
      %v701 = vld [vmem:[#allocation10 + $0x80] sm:$0xff]
      %v702 = vld [vmem:[#allocation10 + $0x88] sm:$0xff]
      %v703 = vld [vmem:[#allocation10 + $0x90] sm:$0xff]
      %v704 = vld [vmem:[#allocation10 + $0x98] sm:$0xff]
      %v705 = vld [vmem:[#allocation10 + $0xa0] sm:$0xff]
      %v706 = vld [vmem:[#allocation10 + $0xa8] sm:$0xff]
      %v707 = vld [vmem:[#allocation10 + $0xb0] sm:$0xff]
      %v708 = vld [vmem:[#allocation10 + $0xb8] sm:$0xff]
      %v709 = vld [vmem:[#allocation10 + $0xc0] sm:$0xff]
      %v710 = vld [vmem:[#allocation10 + $0xc8] sm:$0xff]
      %v711 = vld [vmem:[#allocation10 + $0xd0] sm:$0xff]
      %v712 = vld [vmem:[#allocation10 + $0xd8] sm:$0xff]
      %v713 = vld [vmem:[#allocation10 + $0xe0] sm:$0xff]
      %v714 = vld [vmem:[#allocation10 + $0xe8] sm:$0xff]
      %v715 = vld [vmem:[#allocation10 + $0xf0] sm:$0xff]
      %v716 = vld [vmem:[#allocation10 + $0xf8] sm:$0xff]
      %v717 = vstv %s619
      %v718 = vmul.f32 %v717, %v685
      %v719 = vmul.f32 %v717, %v686
      %v720 = vmul.f32 %v717, %v687
      %v721 = vmul.f32 %v717, %v688
      %v722 = vmul.f32 %v717, %v689
      %v723 = vmul.f32 %v717, %v690
      %v724 = vmul.f32 %v717, %v691
      %v725 = vmul.f32 %v717, %v692
      %v726 = vmul.f32 %v717, %v693
      %v727 = vmul.f32 %v717, %v694
      %v728 = vmul.f32 %v717, %v695
      %v729 = vmul.f32 %v717, %v696
      %v730 = vmul.f32 %v717, %v697
      %v731 = vmul.f32 %v717, %v698
      %v732 = vmul.f32 %v717, %v699
      %v733 = vmul.f32 %v717, %v700
      %v734 = vmul.f32 %v717, %v701
      %v735 = vmul.f32 %v717, %v702
      %v736 = vmul.f32 %v717, %v703
      %v737 = vmul.f32 %v717, %v704
      %v738 = vmul.f32 %v717, %v705
      %v739 = vmul.f32 %v717, %v706
      %v740 = vmul.f32 %v717, %v707
      %v741 = vmul.f32 %v717, %v708
      %v742 = vmul.f32 %v717, %v709
      %v743 = vmul.f32 %v717, %v710
      %v744 = vmul.f32 %v717, %v711
      %v745 = vmul.f32 %v717, %v712
      %v746 = vmul.f32 %v717, %v713
      %v747 = vmul.f32 %v717, %v714
      %v748 = vmul.f32 %v717, %v715
      %v749 = vmul.f32 %v717, %v716
      %v750 = vadd.f32 %v653, %v718
      %v751 = vadd.f32 %v654, %v719
      %v752 = vadd.f32 %v655, %v720
      %v753 = vadd.f32 %v656, %v721
      %v754 = vadd.f32 %v657, %v722
      %v755 = vadd.f32 %v658, %v723
      %v756 = vadd.f32 %v659, %v724
      %v757 = vadd.f32 %v660, %v725
      %v758 = vadd.f32 %v661, %v726
      %v759 = vadd.f32 %v662, %v727
      %v760 = vadd.f32 %v663, %v728
      %v761 = vadd.f32 %v664, %v729
      %v762 = vadd.f32 %v665, %v730
      %v763 = vadd.f32 %v666, %v731
      %v764 = vadd.f32 %v667, %v732
      %v765 = vadd.f32 %v668, %v733
      %v766 = vadd.f32 %v669, %v734
      %v767 = vadd.f32 %v670, %v735
      %v768 = vadd.f32 %v671, %v736
      %v769 = vadd.f32 %v672, %v737
      %v770 = vadd.f32 %v673, %v738
      %v771 = vadd.f32 %v674, %v739
      %v772 = vadd.f32 %v675, %v740
      %v773 = vadd.f32 %v676, %v741
      %v774 = vadd.f32 %v677, %v742
      %v775 = vadd.f32 %v678, %v743
      %v776 = vadd.f32 %v679, %v744
      %v777 = vadd.f32 %v680, %v745
      %v778 = vadd.f32 %v681, %v746
      %v779 = vadd.f32 %v682, %v747
      %v780 = vadd.f32 %v683, %v748
      %v781 = vadd.f32 %v684, %v749
      %782 = vst [vmem:[#allocation10] sm:$0xff] %v750
      %783 = vst [vmem:[#allocation10 + $0x8] sm:$0xff] %v751
      %784 = vst [vmem:[#allocation10 + $0x10] sm:$0xff] %v752
      %785 = vst [vmem:[#allocation10 + $0x18] sm:$0xff] %v753
      %786 = vst [vmem:[#allocation10 + $0x20] sm:$0xff] %v754
      %787 = vst [vmem:[#allocation10 + $0x28] sm:$0xff] %v755
      %788 = vst [vmem:[#allocation10 + $0x30] sm:$0xff] %v756
      %789 = vst [vmem:[#allocation10 + $0x38] sm:$0xff] %v757
      %790 = vst [vmem:[#allocation10 + $0x40] sm:$0xff] %v758
      %791 = vst [vmem:[#allocation10 + $0x48] sm:$0xff] %v759
      %792 = vst [vmem:[#allocation10 + $0x50] sm:$0xff] %v760
      %793 = vst [vmem:[#allocation10 + $0x58] sm:$0xff] %v761
      %794 = vst [vmem:[#allocation10 + $0x60] sm:$0xff] %v762
      %795 = vst [vmem:[#allocation10 + $0x68] sm:$0xff] %v763
      %796 = vst [vmem:[#allocation10 + $0x70] sm:$0xff] %v764
      %797 = vst [vmem:[#allocation10 + $0x78] sm:$0xff] %v765
      %798 = vst [vmem:[#allocation10 + $0x80] sm:$0xff] %v766
      %799 = vst [vmem:[#allocation10 + $0x88] sm:$0xff] %v767
      %800 = vst [vmem:[#allocation10 + $0x90] sm:$0xff] %v768
      %801 = vst [vmem:[#allocation10 + $0x98] sm:$0xff] %v769
      %802 = vst [vmem:[#allocation10 + $0xa0] sm:$0xff] %v770
      %803 = vst [vmem:[#allocation10 + $0xa8] sm:$0xff] %v771
      %804 = vst [vmem:[#allocation10 + $0xb0] sm:$0xff] %v772
      %805 = vst [vmem:[#allocation10 + $0xb8] sm:$0xff] %v773
      %806 = vst [vmem:[#allocation10 + $0xc0] sm:$0xff] %v774
      %807 = vst [vmem:[#allocation10 + $0xc8] sm:$0xff] %v775
      %808 = vst [vmem:[#allocation10 + $0xd0] sm:$0xff] %v776
      %809 = vst [vmem:[#allocation10 + $0xd8] sm:$0xff] %v777
      %810 = vst [vmem:[#allocation10 + $0xe0] sm:$0xff] %v778
      %811 = vst [vmem:[#allocation10 + $0xe8] sm:$0xff] %v779
      %812 = vst [vmem:[#allocation10 + $0xf0] sm:$0xff] %v780
      %813 = vst [vmem:[#allocation10 + $0xf8] sm:$0xff] %v781
      %v814 = vtanh.pop %v750
      %v815 = vtanh.pop %v751
      %v816 = vtanh.pop %v752
      %v817 = vtanh.pop %v753
      %v818 = vtanh.pop %v754
      %v819 = vtanh.pop %v755
      %v820 = vtanh.pop %v756
      %v821 = vtanh.pop %v757
      %v822 = vtanh.pop %v758
      %v823 = vtanh.pop %v759
      %v824 = vtanh.pop %v760
      %v825 = vtanh.pop %v761
      %v826 = vtanh.pop %v762
      %v827 = vtanh.pop %v763
      %v828 = vtanh.pop %v764
      %v829 = vtanh.pop %v765
      %v830 = vtanh.pop %v766
      %v831 = vtanh.pop %v767
      %v832 = vtanh.pop %v768
      %v833 = vtanh.pop %v769
      %v834 = vtanh.pop %v770
      %v835 = vtanh.pop %v771
      %v836 = vtanh.pop %v772
      %v837 = vtanh.pop %v773
      %v838 = vtanh.pop %v774
      %v839 = vtanh.pop %v775
      %v840 = vtanh.pop %v776
      %v841 = vtanh.pop %v777
      %v842 = vtanh.pop %v778
      %v843 = vtanh.pop %v779
      %v844 = vtanh.pop %v780
      %v845 = vtanh.pop %v781
      %846 = vst [vmem:[#allocation11] sm:$0xff] %v814
      %847 = vst [vmem:[#allocation11 + $0x8] sm:$0xff] %v815
      %848 = vst [vmem:[#allocation11 + $0x10] sm:$0xff] %v816
      %849 = vst [vmem:[#allocation11 + $0x18] sm:$0xff] %v817
      %850 = vst [vmem:[#allocation11 + $0x20] sm:$0xff] %v818
      %851 = vst [vmem:[#allocation11 + $0x28] sm:$0xff] %v819
      %852 = vst [vmem:[#allocation11 + $0x30] sm:$0xff] %v820
      %853 = vst [vmem:[#allocation11 + $0x38] sm:$0xff] %v821
      %854 = vst [vmem:[#allocation11 + $0x40] sm:$0xff] %v822
      %855 = vst [vmem:[#allocation11 + $0x48] sm:$0xff] %v823
      %856 = vst [vmem:[#allocation11 + $0x50] sm:$0xff] %v824
      %857 = vst [vmem:[#allocation11 + $0x58] sm:$0xff] %v825
      %858 = vst [vmem:[#allocation11 + $0x60] sm:$0xff] %v826
      %859 = vst [vmem:[#allocation11 + $0x68] sm:$0xff] %v827
      %860 = vst [vmem:[#allocation11 + $0x70] sm:$0xff] %v828
      %861 = vst [vmem:[#allocation11 + $0x78] sm:$0xff] %v829
      %862 = vst [vmem:[#allocation11 + $0x80] sm:$0xff] %v830
      %863 = vst [vmem:[#allocation11 + $0x88] sm:$0xff] %v831
      %864 = vst [vmem:[#allocation11 + $0x90] sm:$0xff] %v832
      %865 = vst [vmem:[#allocation11 + $0x98] sm:$0xff] %v833
      %866 = vst [vmem:[#allocation11 + $0xa0] sm:$0xff] %v834
      %867 = vst [vmem:[#allocation11 + $0xa8] sm:$0xff] %v835
      %868 = vst [vmem:[#allocation11 + $0xb0] sm:$0xff] %v836
      %869 = vst [vmem:[#allocation11 + $0xb8] sm:$0xff] %v837
      %870 = vst [vmem:[#allocation11 + $0xc0] sm:$0xff] %v838
      %871 = vst [vmem:[#allocation11 + $0xc8] sm:$0xff] %v839
      %872 = vst [vmem:[#allocation11 + $0xd0] sm:$0xff] %v840
      %873 = vst [vmem:[#allocation11 + $0xd8] sm:$0xff] %v841
      %874 = vst [vmem:[#allocation11 + $0xe0] sm:$0xff] %v842
      %875 = vst [vmem:[#allocation11 + $0xe8] sm:$0xff] %v843
      %876 = vst [vmem:[#allocation11 + $0xf0] sm:$0xff] %v844
      %877 = vst [vmem:[#allocation11 + $0xf8] sm:$0xff] %v845
    $region41: #{tpu_custom_call.1} parent=1 // pred_fallthru
      _
    // Predicated region
    $region42: #{tpu_custom_call.1} parent=1 // pred_check
      _
    $region43: #{tpu_custom_call.1} parent=1 // pred_check_branch
      %879 = sbr.rel (0) target = $region45
    $region44: #{tpu_custom_call.1} parent=1 // pred_region
      %881 = vsyncadd [#allocation4], 0
      %s882 = sshll.u32 [#allocation10], 4
      %s883 = int_to_ptr.vmem [resolvable:$true] %s882
      %s884 = sshll.u32 %s4, 4
      %s885 = int_to_ptr.hbm [resolvable:$true] %s884
      %890 = dma.vmem_to_hbm [thread:$0]  %s883, 4096, %s885, [#allocation4], 128, 128, 8
    $region45: #{tpu_custom_call.1} parent=1 // pred_fallthru
      _
    // Predicated region
    $region46: #{tpu_custom_call.1} parent=1 // pred_check
      _
    $region47: #{tpu_custom_call.1} parent=1 // pred_check_branch
      %892 = sbr.rel (0) target = $region49
    $region48: #{tpu_custom_call.1} parent=1 // pred_region
      %894 = vsyncadd [#allocation12], 0
      %s895 = sshll.u32 [#allocation11], 4
      %s896 = int_to_ptr.vmem [resolvable:$true] %s895
      %s897 = sshll.u32 %s5, 4
      %s898 = int_to_ptr.hbm [resolvable:$true] %s897
      %903 = dma.vmem_to_hbm [thread:$0]  %s896, 4096, %s898, [#allocation12], 128, 128, 8
    $region49: #{tpu_custom_call.1} parent=1 // pred_fallthru
      _
    // Predicated region
    $region50: #{tpu_custom_call.1} parent=1 // pred_check
      _
    $region51: #{tpu_custom_call.1} parent=1 // pred_check_branch
      %905 = sbr.rel (0) target = $region53
    $region52: #{tpu_custom_call.1} parent=1 // pred_region
      %907 = dma.done [#allocation4], 4096
    $region53: #{tpu_custom_call.1} parent=1 // pred_fallthru
      _
    // Predicated region
    $region54: #{tpu_custom_call.1} parent=1 // pred_check
      _
    $region55: #{tpu_custom_call.1} parent=1 // pred_check_branch
      %909 = sbr.rel (0) target = $region57
    $region56: #{tpu_custom_call.1} parent=1 // pred_region
      %911 = dma.done [#allocation12], 4096
    $region57: #{tpu_custom_call.1} parent=1 // pred_fallthru
      _
    %912 = vsyncpa [#allocation3], 1
    %913 = vsyncpa [#allocation8], 1
    %914 = vsyncpa [#allocation4], 1
    %915 = vsyncpa [#allocation12], 1
    %916 = vsyncpa [#allocation5], 1

</llo_original>
